<compile_context>
chip_gen: v7x
topology: tpu7x:2x2x1
jax: 0.10.0
libtpu: 0.0.40
codegen_flags: <defaults>
</compile_context>

<pallas_src>
import functools

import jax
import jax.numpy as jnp
from jax.experimental import pallas as pl
from jax.experimental.pallas import tpu as pltpu

_SQRT2 = 1.4142135623730951


def _round_up(x: int, m: int) -> int:
    return ((x + m - 1) // m) * m


def _cdiv(a: int, b: int) -> int:
    return (a + b - 1) // b


def _fourier_kernel(t_ref, w_ref, b_ref, o_ref, *, r_pack: int):
    """One row-block of the packed Fourier embedding.

    t_ref: (tbr, R)      f32   R packed timesteps per output row
    w_ref: (R, R*dim)    f32   block-diagonal rows of [2*pi*w, 2*pi*w]
    b_ref: (1, R*dim)    f32   phase offsets ([0]*half + [pi/2]*half, tiled R times)
    o_ref: (tbr, R*dim)  out   [sin | cos] * sqrt(2), R batch rows per output row
    """
    # phases[i, r*dim + j] = t[i, r] * w_ext[j] + b_ext[j]
    # accumulated with broadcast multiplies against the block-diagonal rows of
    # w_ref (zeros kill cross terms) -- exact f32, all VPU, no lane reshuffle.
    phases = b_ref[...] + t_ref[:, 0:1] * w_ref[0:1, :]
    for r in range(1, r_pack):                         # static unroll, r_pack <= 8
        phases = phases + t_ref[:, r:r + 1] * w_ref[r:r + 1, :]
    # cos(x) = sin(x + pi/2): single EUP op, one full-width lane-dense store.
    o_ref[...] = (jnp.sin(phases) * jnp.float32(_SQRT2)).astype(o_ref.dtype)


def init_fourier_params(w: jax.Array) -> jax.Array:
    """Fold the 2*pi constant into the parameter once at init time."""
    return (2.0 * jnp.pi) * w.astype(jnp.float32)


@functools.partial(jax.jit, static_argnames=("out_dtype", "max_block_rows"))
def fourier_encoder(
    t: jax.Array,
    w_scaled: jax.Array,
    *,
    out_dtype=jnp.float32,
    max_block_rows: int = 4096,
) -> jax.Array:
    """t: (B,) (any shape with B elements), w_scaled: (1, half) = 2*pi*w -> (B, 2*half)."""
    half = w_scaled.shape[-1]
    dim = 2 * half
    t_flat = t.reshape(-1).astype(jnp.float32)       # t.view(-1, 1) equivalent
    B = t_flat.shape[0]

    # Row-packing factor: pack R batch rows per output row so stores are
    # lane-dense instead of masked vst.msk when dim < 128.
    r_pack = 1
    if dim < 128:
        cand = max(1, min(128 // dim, 8))
        if B % cand == 0:
            r_pack = cand
    pw = r_pack * dim                                 # packed output row width
    rows = B // r_pack                                # packed output rows

    # Tiny frequency / phase-offset tables (built per call under jit; negligible).
    w_ext = jnp.concatenate([w_scaled, w_scaled], axis=-1).astype(jnp.float32)   # (1, dim)
    b_ext = jnp.concatenate(
        [jnp.zeros((1, half), jnp.float32),
         jnp.full((1, half), jnp.pi / 2, jnp.float32)], axis=-1)                 # (1, dim)
    if r_pack > 1:
        eye = jnp.eye(r_pack, dtype=jnp.float32)
        w_in = (eye[:, :, None] * w_ext[0][None, None, :]).reshape(r_pack, pw)   # block-diag
        b_in = jnp.tile(b_ext, (1, r_pack))                                      # (1, R*dim)
    else:
        w_in = w_ext
        b_in = b_ext
    t_in = t_flat.reshape(rows, r_pack)

    # Row tile: multiple of the sublane granule (16 for bf16 out), >= 2 grid
    # steps when possible (v7x megacore), capped by a conservative VMEM budget
    # (double-buffered out + t blocks + f32 intermediates).
    out_itemsize = jnp.dtype(out_dtype).itemsize
    granule = max(8, 32 // out_itemsize)
    bytes_per_row = pw * (2 * out_itemsize + 4) + 8 * r_pack
    vmem_rows = max(granule, (8 * 1024 * 1024 // bytes_per_row) // granule * granule)
    two_step_rows = _round_up(_cdiv(rows, 2), granule)
    tbr = max(granule, min(_round_up(max_block_rows, granule), vmem_rows, two_step_rows))
    grid = (_cdiv(rows, tbr),)   # ragged last block is masked by Pallas; no pad, no slice

    out = pl.pallas_call(
        functools.partial(_fourier_kernel, r_pack=r_pack),
        out_shape=jax.ShapeDtypeStruct((rows, pw), out_dtype),
        grid=grid,
        in_specs=[
            pl.BlockSpec((tbr, r_pack), lambda i: (i, 0)),     # packed timestep rows
            pl.BlockSpec((r_pack, pw), lambda i: (0, 0)),      # block-diag freqs (reused)
            pl.BlockSpec((1, pw), lambda i: (0, 0)),           # phase offsets (reused)
        ],
        out_specs=pl.BlockSpec((tbr, pw), lambda i: (i, 0)),
        compiler_params=pltpu.CompilerParams(
            dimension_semantics=("parallel",),                 # shard batch across TCs
        ),
    )(t_in, w_in, b_in)

    # (rows, R*dim) -> (B, dim) is a free row-major reshape (no copy, no slice).
    return out.reshape(B, dim)


def fourier_encoder_ref(t: jax.Array, w: jax.Array) -> jax.Array:
    """Pure-JAX reference mirroring the PyTorch forward (takes UNscaled w)."""
    t2d = t.reshape(-1, 1).astype(jnp.float32)
    freqs = 2.0 * jnp.pi * w.astype(jnp.float32) * t2d
    return jnp.concatenate([jnp.sin(freqs), jnp.cos(freqs)], axis=-1) * jnp.sqrt(
        jnp.float32(2.0)
    )


if __name__ == "__main__":
    key = jax.random.PRNGKey(0)
    k_w, k_t, k_t2, k_w2, k_t3 = jax.random.split(key, 5)

    # --- Config 1: dim < 128 -> packed lane-dense path (R = 4) ---
    dim = 32
    half = dim // 2
    batch = 8
    w = jax.random.normal(k_w, (1, half), dtype=jnp.float32)   # nn.Parameter(randn(1, half))
    w_scaled = init_fourier_params(w)
    t = jax.random.uniform(k_t, (batch,), dtype=jnp.float32)

    out = jax.block_until_ready(fourier_encoder(t, w_scaled))
    ref = fourier_encoder_ref(t, w)
    assert out.shape == (batch, dim), out.shape
    assert jnp.allclose(out, ref, atol=1e-5, rtol=1e-5), "mismatch vs reference (packed)"

    # --- Config 2: multi-block grid with a ragged last row block (no pad/slice) ---
    t_big = jax.random.uniform(k_t2, (200,), dtype=jnp.float32)
    out_big = jax.block_until_ready(fourier_encoder(t_big, w_scaled, max_block_rows=32))
    ref_big = fourier_encoder_ref(t_big, w)
    assert out_big.shape == (200, dim), out_big.shape
    assert jnp.allclose(out_big, ref_big, atol=1e-5, rtol=1e-5), "mismatch (ragged grid)"

    # --- Config 3: dim >= 128 (R = 1, already lane-dense), ragged batch ---
    dim2 = 256
    w2 = jax.random.normal(k_w2, (1, dim2 // 2), dtype=jnp.float32)
    w2_scaled = init_fourier_params(w2)
    t3 = jax.random.uniform(k_t3, (9,), dtype=jnp.float32)
    out3 = jax.block_until_ready(fourier_encoder(t3, w2_scaled))
    assert out3.shape == (9, dim2), out3.shape
    assert jnp.allclose(out3, fourier_encoder_ref(t3, w2), atol=1e-5, rtol=1e-5), \
        "mismatch (wide dim)"

    # --- bf16 output (store-bound regime; f32 math in-kernel) ---
    out_bf16 = jax.block_until_ready(
        fourier_encoder(t_big, w_scaled, out_dtype=jnp.bfloat16))
    assert out_bf16.dtype == jnp.bfloat16
    assert jnp.allclose(out_bf16.astype(jnp.float32), ref_big, atol=2e-2, rtol=2e-2), \
        "mismatch (bf16 output)"

    print("KERNEL_OK")
</pallas_src>

<mosaic_0001>
module attributes {stable_mosaic.version = 11 : i64} {
  func.func @_fourier_kernel(%arg0: i32, %arg1: memref<8x4xf32, #tpu.memory_space<vmem>>, %arg2: memref<4x128xf32, #tpu.memory_space<vmem>>, %arg3: memref<1x128xf32, #tpu.memory_space<vmem>>, %arg4: memref<8x128xf32, #tpu.memory_space<vmem>>) attributes {dimension_semantics = [#tpu.dimension_semantics<parallel>], iteration_bounds = array<i64: 1>, scalar_prefetch = 0 : i64, scratch_operands = 0 : i64, tpu.core_type = #tpu.core_type<tc>, window_params = [{transform_indices = @transform_0, window_bounds = array<i64: 8, 4>}, {pipeline_mode = #tpu.pipeline_mode<synchronous>, transform_indices = @transform_1, window_bounds = array<i64: 4, 128>}, {pipeline_mode = #tpu.pipeline_mode<synchronous>, transform_indices = @transform_2, window_bounds = array<i64: 1, 128>}, {transform_indices = @transform_3, window_bounds = array<i64: 8, 128>}]} {
    %c0 = arith.constant 0 : index
    %c0_0 = arith.constant 0 : index
    %0 = vector.load %arg3[%c0, %c0_0] : memref<1x128xf32, #tpu.memory_space<vmem>>, vector<1x128xf32>
    %c0_1 = arith.constant 0 : index
    %c0_2 = arith.constant 0 : index
    %1 = vector.load %arg1[%c0_1, %c0_2] : memref<8x4xf32, #tpu.memory_space<vmem>>, vector<8x1xf32>
    %c0_3 = arith.constant 0 : index
    %c0_4 = arith.constant 0 : index
    %2 = vector.load %arg2[%c0_3, %c0_4] : memref<4x128xf32, #tpu.memory_space<vmem>>, vector<1x128xf32>
    %3 = vector.broadcast %1 : vector<8x1xf32> to vector<8x128xf32>
    %4 = vector.broadcast %2 : vector<1x128xf32> to vector<8x128xf32>
    %5 = arith.mulf %3, %4 : vector<8x128xf32>
    %6 = vector.broadcast %0 : vector<1x128xf32> to vector<8x128xf32>
    %7 = arith.addf %6, %5 : vector<8x128xf32>
    %c0_5 = arith.constant 0 : index
    %c1 = arith.constant 1 : index
    %8 = vector.load %arg1[%c0_5, %c1] : memref<8x4xf32, #tpu.memory_space<vmem>>, vector<8x1xf32>
    %c1_6 = arith.constant 1 : index
    %c0_7 = arith.constant 0 : index
    %9 = vector.load %arg2[%c1_6, %c0_7] : memref<4x128xf32, #tpu.memory_space<vmem>>, vector<1x128xf32>
    %10 = vector.broadcast %8 : vector<8x1xf32> to vector<8x128xf32>
    %11 = vector.broadcast %9 : vector<1x128xf32> to vector<8x128xf32>
    %12 = arith.mulf %10, %11 : vector<8x128xf32>
    %13 = arith.addf %7, %12 : vector<8x128xf32>
    %c0_8 = arith.constant 0 : index
    %c2 = arith.constant 2 : index
    %14 = vector.load %arg1[%c0_8, %c2] : memref<8x4xf32, #tpu.memory_space<vmem>>, vector<8x1xf32>
    %c2_9 = arith.constant 2 : index
    %c0_10 = arith.constant 0 : index
    %15 = vector.load %arg2[%c2_9, %c0_10] : memref<4x128xf32, #tpu.memory_space<vmem>>, vector<1x128xf32>
    %16 = vector.broadcast %14 : vector<8x1xf32> to vector<8x128xf32>
    %17 = vector.broadcast %15 : vector<1x128xf32> to vector<8x128xf32>
    %18 = arith.mulf %16, %17 : vector<8x128xf32>
    %19 = arith.addf %13, %18 : vector<8x128xf32>
    %c0_11 = arith.constant 0 : index
    %c3 = arith.constant 3 : index
    %20 = vector.load %arg1[%c0_11, %c3] : memref<8x4xf32, #tpu.memory_space<vmem>>, vector<8x1xf32>
    %c3_12 = arith.constant 3 : index
    %c0_13 = arith.constant 0 : index
    %21 = vector.load %arg2[%c3_12, %c0_13] : memref<4x128xf32, #tpu.memory_space<vmem>>, vector<1x128xf32>
    %22 = vector.broadcast %20 : vector<8x1xf32> to vector<8x128xf32>
    %23 = vector.broadcast %21 : vector<1x128xf32> to vector<8x128xf32>
    %24 = arith.mulf %22, %23 : vector<8x128xf32>
    %25 = arith.addf %19, %24 : vector<8x128xf32>
    %26 = math.sin %25 : vector<8x128xf32>
    %cst = arith.constant 1.41421354 : f32
    %27 = vector.broadcast %cst : f32 to vector<8x128xf32>
    %28 = arith.mulf %26, %27 : vector<8x128xf32>
    %c0_14 = arith.constant 0 : index
    %c0_15 = arith.constant 0 : index
    %29 = vector.load %arg4[%c0_14, %c0_15] : memref<8x128xf32, #tpu.memory_space<vmem>>, vector<8x128xf32>
    tpu.vector_store %arg4[%c0_14, %c0_15], %28 {strides = array<i32>} : memref<8x128xf32, #tpu.memory_space<vmem>>, vector<8x128xf32>,
    return
  }
  func.func @transform_0(%arg0: i32) -> (i32, i32) {
    %c0_i32 = arith.constant 0 : i32
    %c0_i32_0 = arith.constant 0 : i32
    return %arg0, %c0_i32 : i32, i32
  }
  func.func @transform_1(%arg0: i32) -> (i32, i32) {
    %c0_i32 = arith.constant 0 : i32
    %c0_i32_0 = arith.constant 0 : i32
    %c0_i32_1 = arith.constant 0 : i32
    return %c0_i32, %c0_i32_0 : i32, i32
  }
  func.func @transform_2(%arg0: i32) -> (i32, i32) {
    %c0_i32 = arith.constant 0 : i32
    %c0_i32_0 = arith.constant 0 : i32
    %c0_i32_1 = arith.constant 0 : i32
    return %c0_i32, %c0_i32_0 : i32, i32
  }
  func.func @transform_3(%arg0: i32) -> (i32, i32) {
    %c0_i32 = arith.constant 0 : i32
    %c0_i32_0 = arith.constant 0 : i32
    return %arg0, %c0_i32 : i32, i32
  }
}

</mosaic_0001>

<llo_original>
// kernel: fourier_encoder.1
$region0: #{fourier_encoder.1}
  #allocation0 [shape = 'u32[]', space=smem, size = 0x4, offset = 0x4, fixed_abs, tag = 'smem constant byte address 0x4 - core index']
  #allocation1 [shape = 'u32[144,128]{1,0:T(1,128)}', space=vmem, size = 0x12000, scoped, tag = 'internal scratch']
  %s0 = inlined_call_operand.vmem [shape: f32[2,4], index: 0, kind: input, shape index: {}]
  %s1 = inlined_call_operand.vmem [shape: f32[4,128], index: 1, kind: input, shape index: {}]
  %s2 = inlined_call_operand.vmem [shape: f32[1,128], index: 2, kind: input, shape index: {}]
  %s3 = inlined_call_operand.vmem [shape: f32[2,128], index: 3, kind: output, shape index: {}]
  %s4 = sld [smem:[#allocation0]]
  $region52: #{fourier_encoder.1} parent=0
    _
  %s6 = ssub.s32 1, %s4
  %s7 = scalar_select 0, %s6, %s4
  $region1: #{fourier_encoder.1} parent=0
    #allocation2 [shape = 'u8[4096]{0}', space=vmem, size = 0x1000, scoped, tag = 'output window, operand 0, single buffered']
    // Predicated region
    $region2: #{fourier_encoder.1} parent=1 // pred_check
      _
    $region3: #{fourier_encoder.1} parent=1 // pred_check_branch
      %9 = sbr.rel (0) target = $region5
    $region4: #{fourier_encoder.1} parent=1 // pred_region
      _
    $region5: #{fourier_encoder.1} parent=1 // pred_fallthru
      _
    // Predicated region
    $region6: #{fourier_encoder.1} parent=1 // pred_check
      _
    $region7: #{fourier_encoder.1} parent=1 // pred_check_branch
      %11 = sbr.rel (0) target = $region9
    $region8: #{fourier_encoder.1} parent=1 // pred_region
      _
    $region9: #{fourier_encoder.1} parent=1 // pred_fallthru
      _
    // Predicated region
    $region10: #{fourier_encoder.1} parent=1 // pred_check
      _
    $region11: #{fourier_encoder.1} parent=1 // pred_check_branch
      %13 = sbr.rel (0) target = $region13
    $region12: #{fourier_encoder.1} parent=1 // pred_region
      _
    $region13: #{fourier_encoder.1} parent=1 // pred_fallthru
      _
    %v14 = vld [vmem:[%s2] sm:$0x1]
    %v15 = vld [vmem:[%s0] sm:$0xff]
    %v16 = vld [vmem:[%s1] sm:$0x1]
    %18 = vset.pattern.permute.xlu0 0
    %19 = vperm.xlu0 %18, %v15
    %v20 = vpop.permute.xlu0 %19
    %v22 = vlaneseq
    %v23 = vshrl.u32 %v22, 7
    %v24 = vsub.s32 0, %v23
    %v25 = vrot.slane %v16, %v24
    %v26 = vmul.f32 %v20, %v25
    %v28 = vlaneseq
    %v29 = vshrl.u32 %v28, 7
    %v30 = vsub.s32 0, %v29
    %v31 = vrot.slane %v14, %v30
    %v33 = vadd.f32 %v31, %v26
    %v34 = vld [vmem:[%s1 + $0x1] sm:$0x1]
    %35 = vset.pattern.permute.xlu0 1
    %36 = vperm.xlu0 %35, %v15
    %v37 = vpop.permute.xlu0 %36
    %v39 = vlaneseq
    %v40 = vshrl.u32 %v39, 7
    %v41 = vsub.s32 0, %v40
    %v42 = vrot.slane %v34, %v41
    %v43 = vmul.f32 %v37, %v42
    %v44 = vadd.f32 %v33, %v43
    %v45 = vld [vmem:[%s1 + $0x2] sm:$0x1]
    %46 = vset.pattern.permute.xlu0 2
    %47 = vperm.xlu0 %46, %v15
    %v48 = vpop.permute.xlu0 %47
    %v50 = vlaneseq
    %v51 = vshrl.u32 %v50, 7
    %v52 = vsub.s32 0, %v51
    %v53 = vrot.slane %v45, %v52
    %v54 = vmul.f32 %v48, %v53
    %v55 = vadd.f32 %v44, %v54
    %v56 = vld [vmem:[%s1 + $0x3] sm:$0x1]
    %57 = vset.pattern.permute.xlu0 3
    %58 = vperm.xlu0 %57, %v15
    %v59 = vpop.permute.xlu0 %58
    %v61 = vlaneseq
    %v62 = vshrl.u32 %v61, 7
    %v63 = vsub.s32 0, %v62
    %v64 = vrot.slane %v56, %v63
    %v65 = vmul.f32 %v59, %v64
    %v66 = vadd.f32 %v55, %v65
    %v67 = vand.u32 2147483647, %v66
    %vm68 = vcmp.le.f32.partialorder %v67, 0.7853982
    %vm69 = vcmp.lt.s32.totalorder %v66, 0
    %v70 = vand.u32 %v66, 2139095040
    %v71 = vshrl.u32 %v70, 23
    %v72 = vsub.s32 %v71, 127
    %v73 = vand.u32 2147483647, %v66
    %v74 = vand.u32 %v73, 8388607
    %v75 = vor.u32 %v74, 8388608
    %v76 = vsub.s32 0, %v75
    %v77 = vadd.s32 %v72, 1
    %vm78 = vcmp.gt.s32.totalorder %v77, 0
    %v79 = vsel %vm78, %v77, 0
    %v80 = vshrl.u32 %v79, 5
    %v81 = vand.u32 %v79, 31
    %v82 = vsub.s32 32, %v81
    %v83 = vshrl.u32 683565275, %v82
    %v84 = vshll.u32 683565275, %v81
    %v85 = vshrl.u32 2475754826, %v82
    %v86 = vor.u32 %v84, %v85
    %v87 = vshll.u32 2475754826, %v81
    %v88 = vshrl.u32 2131351028, %v82
    %v89 = vor.u32 %v87, %v88
    %v90 = vshll.u32 2131351028, %v81
    %v91 = vshrl.u32 2102212464, %v82
    %v92 = vor.u32 %v90, %v91
    %v93 = vshll.u32 2102212464, %v81
    %v94 = vshrl.u32 920167782, %v82
    %v95 = vor.u32 %v93, %v94
    %v96 = vshll.u32 920167782, %v81
    %v97 = vshrl.u32 1326507024, %v82
    %v98 = vor.u32 %v96, %v97
    %vm99 = vcmp.lt.s32.totalorder %v80, 1
    %vm100 = vcmp.lt.s32.totalorder %v80, 2
    %vm101 = vcmp.lt.s32.totalorder %v80, 3
    %vm102 = vcmp.lt.s32.totalorder %v80, 4
    %v103 = vsel %vm99, %v83, %v86
    %v104 = vsel %vm102, %v92, 2102212464
    %v105 = vsel %vm101, %v89, %v104
    %v106 = vsel %vm100, %v103, %v105
    %v107 = vsel %vm99, %v86, %v89
    %v108 = vsel %vm102, %v95, 920167782
    %v109 = vsel %vm101, %v92, %v108
    %v110 = vsel %vm100, %v107, %v109
    %v111 = vsel %vm99, %v89, %v92
    %v112 = vsel %vm102, %v98, 1326507024
    %v113 = vsel %vm101, %v95, %v112
    %v114 = vsel %vm100, %v111, %v113
    %v115 = vshll.u32 %v75, 8
    %v116 = vmul.u32.u64.compose %v115, %v114
    %v117 = vextract.low.u32 %v116
    %v118 = vextract.high.u32 %v116
    %v119 = vmul.u32.u64.compose %v115, %v110
    %v120 = vextract.low.u32 %v119
    %v121 = vextract.high.u32 %v119
    %v122 = vmul.u32 %v115, %v106
    %v123 = vadd.s32 %v118, %v120
    %vm124 = vc.u32 %v118, %v120
    %v125 = vadd.s32 %v121, 1
    %v126 = vsel %vm124, %v125, %v121
    %v127 = vadd.s32 %v122, %v126
    %v128 = vadd.s32 %v127, 536870912
    %v129 = vshrl.u32 %v128, 30
    %v130 = vshll.u32 %v129, 30
    %v131 = vsub.s32 %v127, %v130
    %vm132 = vcmp.lt.s32.totalorder %v131, 0
    %v133 = vsub.s32 0, %v131
    %v134 = vsel %vm132, %v133, %v131
    %v135 = vclz %v134
    %v136 = vsub.s32 %v135, 2
    %vm137 = vcmp.gt.s32.totalorder 0, %v136
    %v138 = vsel %vm137, 0, %v136
    %v139 = vsub.s32 32, %v138
    %v140 = vshll.u32 %v131, %v138
    %v141 = vshrl.u32 %v123, %v139
    %v142 = vor.u32 %v140, %v141
    %v143 = vsub.s32 4294967266, %v138
    %v144 = vadd.s32 %v143, 127
    %v145 = vshll.u32 %v144, 23
    %v146 = vor.u32 4788187, %v145
    %v147 = vand.u32 2147483647, %v146
    %v149 = vcvt.s32.f32 %v142
    %v150 = vmul.f32 %v149, %v147
    %v151 = vxor.u32 %v150, 2147483648
    %v152 = vsel %vm69, %v151, %v150
    %v153 = vsub.s32 4, %v129
    %v154 = vsel %vm69, %v153, %v129
    %v155 = vsel %vm68, %v66, %v152
    %v156 = vsel %vm68, 0, %v154
    %v157 = vcosq.f32.pop %v155
    %v158 = vsinq.f32.pop %v155
    %vm159 = vweird.f32 %v66
    %v160 = vadd.s32 %v156, 3
    %v161 = vand.u32 %v160, 3
    %vm162 = vcmp.lt.s32.totalorder %v161, 2
    %vm163 = vcmp.eq.s32.totalorder %v161, 0
    %v164 = vxor.u32 %v158, 2147483648
    %v165 = vsel %vm163, %v157, %v164
    %vm166 = vcmp.eq.s32.totalorder %v161, 2
    %v167 = vxor.u32 %v157, 2147483648
    %v168 = vsel %vm166, %v167, %v158
    %v169 = vsel %vm162, %v165, %v168
    %v170 = vsel %vm159, nan, %v169
    %v171 = vmul.f32 %v170, 1.4142135
    %172 = vst [vmem:[#allocation2] sm:$0xff] %v171
    // Predicated region
    $region14: #{fourier_encoder.1} parent=1 // pred_check
      _
    $region15: #{fourier_encoder.1} parent=1 // pred_check_branch
      %174 = sbr.rel (0) target = $region17
    $region16: #{fourier_encoder.1} parent=1 // pred_region
      // Predicated region
      $region18: #{fourier_encoder.1} parent=16 // pred_check
        _
      $region19: #{fourier_encoder.1} parent=16 // pred_check_branch
        %176 = sbr.rel (0) target = $region21
      $region20: #{fourier_encoder.1} parent=16 // pred_region
        // Predicated region
        $region22: #{fourier_encoder.1} parent=20 // pred_check
          _
        $region23: #{fourier_encoder.1} parent=20 // pred_check_branch
          %178 = sbr.rel target = $region25
        $region24: #{fourier_encoder.1} parent=20 // pred_region
          // Predicated region
          $region37: #{fourier_encoder.1} parent=24 // pred_check
            _
          $region38: #{fourier_encoder.1} parent=24 // pred_check_branch
            %193 = sbr.rel (0) target = $region40
          $region39: #{fourier_encoder.1} parent=24 // pred_region
            loop: start=0, step=1, limit=1
            $region41: #{fourier_encoder.1} parent=39 // loop_pre_header
              _
            $region42: #{fourier_encoder.1} parent=39 // loop_header
              %s196 = sphi 0, %s200
              %p197 = scmp.ge.s32.totalorder %s196, 1
              %s201 = sphi [#allocation2], [#allocation2]
              %s202 = sphi %s3, %s3
            $region43: #{fourier_encoder.1} parent=39 // loop_header_branch
              %199 = sbr.rel (%p197) target = $region47
            $region44: #{fourier_encoder.1} parent=39 // loop_body
              %v203 = vld [vmem:[%s201] sm:$0x3]
              %204 = vst [vmem:[%s202] sm:$0x3] %v203
            $region45: #{fourier_encoder.1} parent=39 // loop_footer
              %s200 = sadd.s32 1, %s196
            $region46: #{fourier_encoder.1} parent=39 // loop_footer_branch
              %195 = sbr.rel target = $region42
            $region47: #{fourier_encoder.1} parent=39 // loop_exit
              _
          $region40: #{fourier_encoder.1} parent=24 // pred_fallthru
            _
        $region25: #{fourier_encoder.1} parent=20 // pred_fallthru
          _
        // Predicated region
        $region26: #{fourier_encoder.1} parent=20 // pred_check
          _
        $region27: #{fourier_encoder.1} parent=20 // pred_check_branch
          %180 = sbr.rel (0) target = $region29
        $region28: #{fourier_encoder.1} parent=20 // pred_region
          loop: start=0, step=1, limit=1
          $region30: #{fourier_encoder.1} parent=28 // loop_pre_header
            _
          $region31: #{fourier_encoder.1} parent=28 // loop_header
            %s183 = sphi 0, %s187
            %p184 = scmp.ge.s32.totalorder %s183, 1
            %s188 = sphi [#allocation2], [#allocation2]
            %s189 = sphi %s3, %s3
          $region32: #{fourier_encoder.1} parent=28 // loop_header_branch
            %186 = sbr.rel (%p184) target = $region36
          $region33: #{fourier_encoder.1} parent=28 // loop_body
            %v190 = vld [vmem:[%s188] sm:$0x3]
            %191 = vst [vmem:[%s189] sm:$0x3] %v190
          $region34: #{fourier_encoder.1} parent=28 // loop_footer
            %s187 = sadd.s32 1, %s183
          $region35: #{fourier_encoder.1} parent=28 // loop_footer_branch
            %182 = sbr.rel target = $region31
          $region36: #{fourier_encoder.1} parent=28 // loop_exit
            _
        $region29: #{fourier_encoder.1} parent=20 // pred_fallthru
          _
      $region21: #{fourier_encoder.1} parent=16 // pred_fallthru
        _
      %205 = vnop
    $region17: #{fourier_encoder.1} parent=1 // pred_fallthru
      _
    // Predicated region
    $region48: #{fourier_encoder.1} parent=1 // pred_check
      _
    $region49: #{fourier_encoder.1} parent=1 // pred_check_branch
      %207 = sbr.rel (0) target = $region51
    $region50: #{fourier_encoder.1} parent=1 // pred_region
      _
    $region51: #{fourier_encoder.1} parent=1 // pred_fallthru
      _

</llo_original>
